<compile_context>
chip_gen: v7x
topology: tpu7x:2x2x1
jax: 0.10.0
libtpu: 0.0.40
codegen_flags: <defaults>
</compile_context>

<pallas_src>
import functools

import jax
import jax.numpy as jnp
from jax.experimental import pallas as pl
from jax.experimental.pallas import tpu as pltpu

_BN_EPS = 1e-5
_NEG_SLOPE = 0.01  # nn.LeakyReLU default


def _round_up(n, m):
    return ((n + m - 1) // m) * m


# ----------------------------------------------------------------------------
# Fused Pallas kernel (built per network depth; depth is static at trace time)
# ----------------------------------------------------------------------------
def _make_fused_mlp_kernel(num_hidden, neg_slope=_NEG_SLOPE):
    """Kernel refs: (x, w0, b0, w1, b1, ..., w_out, b_out, out)."""

    def kernel(*refs):
        x_ref = refs[0]
        o_ref = refs[-1]
        wb = refs[1:-1]

        h = x_ref[...]
        for i in range(num_hidden):
            w = wb[2 * i][...]
            b = wb[2 * i + 1][...]
            # Linear (+ folded BN) on the MXU, f32 accumulation.
            y = jnp.dot(h, w, preferred_element_type=jnp.float32) + b
            # LeakyReLU.
            h = jnp.where(y >= 0.0, y, neg_slope * y)
            # Dropout: identity in eval mode.
        w = wb[2 * num_hidden][...]
        b = wb[2 * num_hidden + 1][...]
        o_ref[...] = (jnp.dot(h, w, preferred_element_type=jnp.float32) + b).astype(
            o_ref.dtype
        )

    return kernel


# ----------------------------------------------------------------------------
# Parameter construction (raw, PyTorch-style) and fold+pad for the kernel
# ----------------------------------------------------------------------------
def init_params(key, input_size, hidden_layer_sizes, output_size):
    """Deterministic raw params matching ImprovedNet's layers (eval mode)."""
    params = []
    prev = input_size
    for size in hidden_layer_sizes:
        key, kw, kb, kg, kbeta, km, kv = jax.random.split(key, 7)
        # Linear weight stored as (in, out)  (PyTorch stores (out, in)).
        w = jax.random.normal(kw, (prev, size), jnp.float32) * (1.0 / jnp.sqrt(prev))
        b = jax.random.normal(kb, (1, size), jnp.float32) * 0.01
        gamma = 1.0 + 0.1 * jax.random.normal(kg, (1, size), jnp.float32)
        beta = 0.1 * jax.random.normal(kbeta, (1, size), jnp.float32)
        running_mean = 0.05 * jax.random.normal(km, (1, size), jnp.float32)
        running_var = 1.0 + 0.1 * jax.random.uniform(kv, (1, size), jnp.float32)
        params.append(dict(w=w, b=b, gamma=gamma, beta=beta,
                           mean=running_mean, var=running_var))
        prev = size
    key, kw, kb = jax.random.split(key, 3)
    w_out = jax.random.normal(kw, (prev, output_size), jnp.float32) * (1.0 / jnp.sqrt(prev))
    b_out = jax.random.normal(kb, (1, output_size), jnp.float32) * 0.01
    params.append(dict(w=w_out, b=b_out))
    return params


def fold_and_pad(raw_params, input_size, hidden_layer_sizes, output_size):
    """Fold BN(eval) into each Linear; pad only INTERNAL hidden dims to 128."""
    sizes = [input_size] + list(hidden_layer_sizes) + [output_size]
    # External dims (input / output) stay natural-sized -> minimal HBM traffic.
    padded = [sizes[0]] + [_round_up(s, 128) for s in sizes[1:-1]] + [sizes[-1]]

    flat = []
    for li, p in enumerate(raw_params):
        w, b = p["w"], p["b"]
        if "gamma" in p:  # hidden layer: fold BN into (W, b)
            inv_std = 1.0 / jnp.sqrt(p["var"] + _BN_EPS)
            scale = p["gamma"] * inv_std                     # (1, Fout)
            shift = p["beta"] - p["mean"] * scale            # (1, Fout)
            w = w * scale
            b = b * scale + shift
        fin_p, fout_p = padded[li], padded[li + 1]
        wp = jnp.zeros((fin_p, fout_p), jnp.float32).at[: w.shape[0], : w.shape[1]].set(w)
        bp = jnp.zeros((1, fout_p), jnp.float32).at[:, : b.shape[1]].set(b)
        flat += [wp, bp]
    return tuple(flat), tuple(padded)


# ----------------------------------------------------------------------------
# Forward pass (hot path: one fused pallas_call)
# ----------------------------------------------------------------------------
@functools.partial(jax.jit, static_argnames=("padded_sizes", "block_b"))
def fused_mlp_forward(x, flat_params, *, padded_sizes, block_b=512):
    B, Fin = x.shape
    assert Fin == padded_sizes[0], "input feature dim mismatch"
    num_layers = len(flat_params) // 2
    num_hidden = num_layers - 1
    fout = padded_sizes[-1]

    kernel = _make_fused_mlp_kernel(num_hidden)

    if B <= block_b:
        # --- small batch: single invocation, whole arrays resident in VMEM ---
        vmem = pltpu.MemorySpace.VMEM
        return pl.pallas_call(
            kernel,
            out_shape=jax.ShapeDtypeStruct((B, fout), jnp.float32),
            in_specs=[pl.BlockSpec(memory_space=vmem)] * (1 + len(flat_params)),
            out_specs=pl.BlockSpec(memory_space=vmem),
        )(x, *flat_params)

    # --- large batch: tile rows, "parallel" axis (v7x 2-TC sharding) ---------
    b_pad = _round_up(B, block_b)
    x_p = jnp.pad(x, ((0, b_pad - B), (0, 0))) if b_pad != B else x

    in_specs = [pl.BlockSpec((block_b, Fin), lambda i: (i, 0))]
    for j in range(num_layers):
        fi, fo = padded_sizes[j], padded_sizes[j + 1]
        in_specs.append(pl.BlockSpec((fi, fo), lambda i: (0, 0)))   # weight resident
        in_specs.append(pl.BlockSpec((1, fo), lambda i: (0, 0)))    # bias resident
    out_p = pl.pallas_call(
        kernel,
        out_shape=jax.ShapeDtypeStruct((b_pad, fout), jnp.float32),
        grid=(b_pad // block_b,),
        in_specs=in_specs,
        out_specs=pl.BlockSpec((block_b, fout), lambda i: (i, 0)),
        compiler_params=pltpu.CompilerParams(dimension_semantics=("parallel",)),
    )(x_p, *flat_params)
    return out_p[:B] if b_pad != B else out_p


# ----------------------------------------------------------------------------
# Pure-JAX reference (un-folded PyTorch eval-mode math) for sanity checking
# ----------------------------------------------------------------------------
def reference_forward(x, raw_params):
    h = x
    for p in raw_params[:-1]:
        y = h @ p["w"] + p["b"]
        y = (y - p["mean"]) / jnp.sqrt(p["var"] + _BN_EPS) * p["gamma"] + p["beta"]
        h = jnp.where(y >= 0.0, y, _NEG_SLOPE * y)
    last = raw_params[-1]
    return h @ last["w"] + last["b"]


# ----------------------------------------------------------------------------
if __name__ == "__main__":
    # Shapes consistent with the module: batch=8, input=32, hidden=[64,48], out=16
    input_size = 32
    hidden_layer_sizes = [64, 48]
    output_size = 16
    batch = 8

    key = jax.random.PRNGKey(0)
    kx, kp, kx2 = jax.random.split(key, 3)
    x = jax.random.normal(kx, (batch, input_size), jnp.float32)
    raw_params = init_params(kp, input_size, hidden_layer_sizes, output_size)
    flat_params, padded_sizes = fold_and_pad(
        raw_params, input_size, hidden_layer_sizes, output_size)

    # Small-batch path (no grid, whole arrays in VMEM).
    out = fused_mlp_forward(x, flat_params, padded_sizes=padded_sizes)
    out = jax.block_until_ready(out)
    ref = reference_forward(x, raw_params)
    assert out.shape == (batch, output_size)
    assert jnp.allclose(out, ref, atol=1e-3, rtol=1e-3), "small-batch mismatch vs reference"

    # Large-batch path (batch-tiled "parallel" grid, weights resident in VMEM,
    # non-divisible batch to exercise the pad/slice path).
    big_batch = 1280
    x_big = jax.random.normal(kx2, (big_batch, input_size), jnp.float32)
    out_big = fused_mlp_forward(x_big, flat_params, padded_sizes=padded_sizes)
    out_big = jax.block_until_ready(out_big)
    ref_big = reference_forward(x_big, raw_params)
    assert out_big.shape == (big_batch, output_size)
    assert jnp.allclose(out_big, ref_big, atol=1e-3, rtol=1e-3), "big-batch mismatch vs reference"

    print("KERNEL_OK")
</pallas_src>

<mosaic_0001>
module attributes {stable_mosaic.version = 11 : i64} {
  func.func @kernel(%arg0: memref<8x32xf32, #tpu.memory_space<vmem>>, %arg1: memref<32x128xf32, #tpu.memory_space<vmem>>, %arg2: memref<1x128xf32, #tpu.memory_space<vmem>>, %arg3: memref<128x128xf32, #tpu.memory_space<vmem>>, %arg4: memref<1x128xf32, #tpu.memory_space<vmem>>, %arg5: memref<128x16xf32, #tpu.memory_space<vmem>>, %arg6: memref<1x16xf32, #tpu.memory_space<vmem>>, %arg7: memref<8x16xf32, #tpu.memory_space<vmem>>) attributes {dimension_semantics = [], scalar_prefetch = 0 : i64, scratch_operands = 0 : i64, tpu.core_type = #tpu.core_type<tc>} {
    %c0 = arith.constant 0 : index
    %c0_0 = arith.constant 0 : index
    %0 = vector.load %arg0[%c0, %c0_0] : memref<8x32xf32, #tpu.memory_space<vmem>>, vector<8x32xf32>
    %c0_1 = arith.constant 0 : index
    %c0_2 = arith.constant 0 : index
    %1 = vector.load %arg1[%c0_1, %c0_2] : memref<32x128xf32, #tpu.memory_space<vmem>>, vector<32x128xf32>
    %c0_3 = arith.constant 0 : index
    %c0_4 = arith.constant 0 : index
    %2 = vector.load %arg2[%c0_3, %c0_4] : memref<1x128xf32, #tpu.memory_space<vmem>>, vector<1x128xf32>
    %cst = arith.constant dense<0.000000e+00> : vector<8x128xf32>
    %3 = tpu.matmul %0, %1, %cst {dimension_numbers = #tpu.dot_dimension_numbers<[1], [0], [0], [1], [0, 0, 1, 1], [], []>} : vector<8x32xf32>, vector<32x128xf32>, vector<8x128xf32> -> vector<8x128xf32>
    %4 = vector.broadcast %2 : vector<1x128xf32> to vector<8x128xf32>
    %5 = arith.addf %3, %4 : vector<8x128xf32>
    %cst_5 = arith.constant 0.000000e+00 : f32
    %6 = vector.broadcast %cst_5 : f32 to vector<8x128xf32>
    %7 = arith.cmpf oge, %5, %6 : vector<8x128xf32>
    %cst_6 = arith.constant 0.00999999977 : f32
    %8 = vector.broadcast %cst_6 : f32 to vector<8x128xf32>
    %9 = arith.mulf %8, %5 : vector<8x128xf32>
    %10 = arith.select %7, %5, %9 : vector<8x128xi1>, vector<8x128xf32>
    %c0_7 = arith.constant 0 : index
    %c0_8 = arith.constant 0 : index
    %11 = vector.load %arg3[%c0_7, %c0_8] : memref<128x128xf32, #tpu.memory_space<vmem>>, vector<128x128xf32>
    %c0_9 = arith.constant 0 : index
    %c0_10 = arith.constant 0 : index
    %12 = vector.load %arg4[%c0_9, %c0_10] : memref<1x128xf32, #tpu.memory_space<vmem>>, vector<1x128xf32>
    %cst_11 = arith.constant dense<0.000000e+00> : vector<8x128xf32>
    %13 = tpu.matmul %10, %11, %cst_11 {dimension_numbers = #tpu.dot_dimension_numbers<[1], [0], [0], [1], [0, 0, 1, 1], [], []>} : vector<8x128xf32>, vector<128x128xf32>, vector<8x128xf32> -> vector<8x128xf32>
    %14 = vector.broadcast %12 : vector<1x128xf32> to vector<8x128xf32>
    %15 = arith.addf %13, %14 : vector<8x128xf32>
    %cst_12 = arith.constant 0.000000e+00 : f32
    %16 = vector.broadcast %cst_12 : f32 to vector<8x128xf32>
    %17 = arith.cmpf oge, %15, %16 : vector<8x128xf32>
    %cst_13 = arith.constant 0.00999999977 : f32
    %18 = vector.broadcast %cst_13 : f32 to vector<8x128xf32>
    %19 = arith.mulf %18, %15 : vector<8x128xf32>
    %20 = arith.select %17, %15, %19 : vector<8x128xi1>, vector<8x128xf32>
    %c0_14 = arith.constant 0 : index
    %c0_15 = arith.constant 0 : index
    %21 = vector.load %arg5[%c0_14, %c0_15] : memref<128x16xf32, #tpu.memory_space<vmem>>, vector<128x16xf32>
    %c0_16 = arith.constant 0 : index
    %c0_17 = arith.constant 0 : index
    %22 = vector.load %arg6[%c0_16, %c0_17] : memref<1x16xf32, #tpu.memory_space<vmem>>, vector<1x16xf32>
    %cst_18 = arith.constant dense<0.000000e+00> : vector<8x16xf32>
    %23 = tpu.matmul %20, %21, %cst_18 {dimension_numbers = #tpu.dot_dimension_numbers<[1], [0], [0], [1], [0, 0, 1, 1], [], []>} : vector<8x128xf32>, vector<128x16xf32>, vector<8x16xf32> -> vector<8x16xf32>
    %24 = vector.broadcast %22 : vector<1x16xf32> to vector<8x16xf32>
    %25 = arith.addf %23, %24 : vector<8x16xf32>
    %c0_19 = arith.constant 0 : index
    %c0_20 = arith.constant 0 : index
    %26 = vector.load %arg7[%c0_19, %c0_20] : memref<8x16xf32, #tpu.memory_space<vmem>>, vector<8x16xf32>
    tpu.vector_store %arg7[%c0_19, %c0_20], %25 {strides = array<i32>} : memref<8x16xf32, #tpu.memory_space<vmem>>, vector<8x16xf32>,
    return
  }
}

</mosaic_0001>

<llo_original>
// kernel: fused_mlp_forward.1
$region0: #{fused_mlp_forward.1}
  #allocation0 [shape = 'u32[]', space=smem, size = 0x4, offset = 0x4, fixed_abs, tag = 'smem constant byte address 0x4 - core index']
  #allocation1 [shape = 'u32[144,128]{1,0:T(1,128)}', space=vmem, size = 0x12000, scoped, tag = 'internal scratch']
  %s0 = inlined_call_operand.vmem [shape: f32[8,32], index: 0, kind: input, shape index: {}]
  %s1 = inlined_call_operand.hbm [shape: f32[32,128], index: 1, kind: input, shape index: {}]
  %s2 = inlined_call_operand.vmem [shape: f32[1,128], index: 2, kind: input, shape index: {}]
  %s3 = inlined_call_operand.vmem [shape: f32[128,128], index: 3, kind: input, shape index: {}]
  %s4 = inlined_call_operand.vmem [shape: f32[1,128], index: 4, kind: input, shape index: {}]
  %s5 = inlined_call_operand.vmem [shape: f32[128,16], index: 5, kind: input, shape index: {}]
  %s6 = inlined_call_operand.vmem [shape: f32[1,16], index: 6, kind: input, shape index: {}]
  %s7 = inlined_call_operand.hbm [shape: f32[8,16], index: 7, kind: output, shape index: {}]
  %s8 = sld [smem:[#allocation0]]
  $region42: #{fused_mlp_forward.1} parent=0
    _
  %s10 = ssub.s32 1, %s8
  %s11 = scalar_select 0, %s10, %s8
  $region1: #{fused_mlp_forward.1} parent=0
    #allocation2 [shape = 'u8[16384]{0}', space=vmem, size = 0x4000, scoped, tag = 'input window, operand 1, single buffered']
    #allocation3 [shape = 's32[1]{0}', space=sflag, size = 0x4, scoped, tag = 'scoped memory for fused_mlp_forward.1']
    #allocation4 [shape = 's32[1]{0}', space=sflag, size = 0x4, scoped, tag = 'scoped memory for fused_mlp_forward.1']
    #allocation5 [shape = 'u8[4096]{0}', space=vmem, size = 0x1000, scoped, tag = 'output window, operand 0, single buffered']
    %12 = vsyncpa [#allocation3], 0
    %13 = vsyncpa [#allocation4], 0
    // Predicated region
    $region2: #{fused_mlp_forward.1} parent=1 // pred_check
      _
    $region3: #{fused_mlp_forward.1} parent=1 // pred_check_branch
      %15 = sbr.rel (0) target = $region5
    $region4: #{fused_mlp_forward.1} parent=1 // pred_region
      _
    $region5: #{fused_mlp_forward.1} parent=1 // pred_fallthru
      _
    // Predicated region
    $region6: #{fused_mlp_forward.1} parent=1 // pred_check
      _
    $region7: #{fused_mlp_forward.1} parent=1 // pred_check_branch
      %17 = sbr.rel (0) target = $region9
    $region8: #{fused_mlp_forward.1} parent=1 // pred_region
      %s19 = ssub.s32 512, 512
      %20 = vsyncadd [#allocation3], %s19
      %s21 = sshll.u32 [#allocation2], 4
      %s22 = int_to_ptr.vmem [resolvable:$true] %s21
      %27 = dma.hbm_to_vmem [thread:$0]  %s1, 512, %s22, [#allocation3], 128, 128, 8
    $region9: #{fused_mlp_forward.1} parent=1 // pred_fallthru
      _
    // Predicated region
    $region10: #{fused_mlp_forward.1} parent=1 // pred_check
      _
    $region11: #{fused_mlp_forward.1} parent=1 // pred_check_branch
      %29 = sbr.rel (0) target = $region13
    $region12: #{fused_mlp_forward.1} parent=1 // pred_region
      _
    $region13: #{fused_mlp_forward.1} parent=1 // pred_fallthru
      _
    // Predicated region
    $region14: #{fused_mlp_forward.1} parent=1 // pred_check
      _
    $region15: #{fused_mlp_forward.1} parent=1 // pred_check_branch
      %31 = sbr.rel (0) target = $region17
    $region16: #{fused_mlp_forward.1} parent=1 // pred_region
      _
    $region17: #{fused_mlp_forward.1} parent=1 // pred_fallthru
      _
    // Predicated region
    $region18: #{fused_mlp_forward.1} parent=1 // pred_check
      _
    $region19: #{fused_mlp_forward.1} parent=1 // pred_check_branch
      %33 = sbr.rel (0) target = $region21
    $region20: #{fused_mlp_forward.1} parent=1 // pred_region
      _
    $region21: #{fused_mlp_forward.1} parent=1 // pred_fallthru
      _
    // Predicated region
    $region22: #{fused_mlp_forward.1} parent=1 // pred_check
      _
    $region23: #{fused_mlp_forward.1} parent=1 // pred_check_branch
      %35 = sbr.rel (0) target = $region25
    $region24: #{fused_mlp_forward.1} parent=1 // pred_region
      _
    $region25: #{fused_mlp_forward.1} parent=1 // pred_fallthru
      _
    // Predicated region
    $region26: #{fused_mlp_forward.1} parent=1 // pred_check
      _
    $region27: #{fused_mlp_forward.1} parent=1 // pred_check_branch
      %37 = sbr.rel (0) target = $region29
    $region28: #{fused_mlp_forward.1} parent=1 // pred_region
      _
    $region29: #{fused_mlp_forward.1} parent=1 // pred_fallthru
      _
    // Predicated region
    $region30: #{fused_mlp_forward.1} parent=1 // pred_check
      _
    $region31: #{fused_mlp_forward.1} parent=1 // pred_check_branch
      %39 = sbr.rel (0) target = $region33
    $region32: #{fused_mlp_forward.1} parent=1 // pred_region
      %40 = dma.done [#allocation3], 512
    $region33: #{fused_mlp_forward.1} parent=1 // pred_fallthru
      _
    %v41 = vld [vmem:[%s0] sm:$0xff]
    %v42 = vld [vmem:[#allocation2] sm:$0xff]
    %v43 = vld [vmem:[#allocation2 + $0x8] sm:$0xff]
    %v44 = vld [vmem:[#allocation2 + $0x10] sm:$0xff]
    %v45 = vld [vmem:[#allocation2 + $0x18] sm:$0xff]
    %v46 = vld [vmem:[%s2] sm:$0x1]
    %v48 = vlaneseq
    %v49 = vshrl.u32 %v48, 7
    %v50 = vsub.s32 0, %v49
    %v51 = vrot.slane %v46, %v50
    %vm53 = vcmask 261120
    %v55 = vsel %vm53, %v41, 0
    %57 = vmatprep.subr.mxu0 0.0
    %58 = vmatpush1.msra.mxu0 %v42
    %59 = vmatprep.subr.mxu0 0.0
    %60 = vmatpush1.msra.mxu0 %v43
    %61 = vmatprep.subr.mxu0 0.0
    %62 = vmatpush1.msra.mxu0 %v44
    %63 = vmatprep.subr.mxu0 0.0
    %64 = vmatpush1.msra.mxu0 %v45
    %65 = vmatprep.subr.mxu0 0.0
    %66 = vmatpush1.msra.mxu0 0.0
    %67 = vmatprep.subr.mxu0 0.0
    %68 = vmatpush1.msra.mxu0 0.0
    %69 = vmatprep.subr.mxu0 0.0
    %70 = vmatpush1.msra.mxu0 0.0
    %71 = vmatprep.subr.mxu0 0.0
    %72 = vmatpush1.msra.mxu0 0.0
    %73 = vmatprep.subr.mxu0 0.0
    %74 = vmatpush1.msra.mxu0 0.0
    %75 = vmatprep.subr.mxu0 0.0
    %76 = vmatpush1.msra.mxu0 0.0
    %77 = vmatprep.subr.mxu0 0.0
    %78 = vmatpush1.msra.mxu0 0.0
    %79 = vmatprep.subr.mxu0 0.0
    %80 = vmatpush1.msra.mxu0 0.0
    %81 = vmatprep.subr.mxu0 0.0
    %82 = vmatpush1.msra.mxu0 0.0
    %83 = vmatprep.subr.mxu0 0.0
    %84 = vmatpush1.msra.mxu0 0.0
    %85 = vmatprep.subr.mxu0 0.0
    %86 = vmatpush1.msra.mxu0 0.0
    %87 = vmatprep.subr.mxu0 0.0
    %88 = vmatpush1.msra.mxu0 0.0
    %89 = vmatprep.subr.mxu0 0.0
    %90 = vmatpush1.msra.mxu0 0.0
    %91 = vmatprep.subr.mxu0 0.0
    %92 = vmatpush1.msra.mxu0 0.0
    %93 = vmatprep.subr.mxu0 0.0
    %94 = vmatpush1.msra.mxu0 0.0
    %95 = vmatprep.subr.mxu0 0.0
    %96 = vmatpush1.msra.mxu0 0.0
    %97 = vmatprep.subr.mxu0 0.0
    %98 = vmatpush1.msra.mxu0 0.0
    %99 = vmatprep.subr.mxu0 0.0
    %100 = vmatpush1.msra.mxu0 0.0
    %101 = vmatprep.subr.mxu0 0.0
    %102 = vmatpush1.msra.mxu0 0.0
    %103 = vmatprep.subr.mxu0 0.0
    %104 = vmatpush1.msra.mxu0 0.0
    %105 = vmatprep.subr.mxu0 0.0
    %106 = vmatpush1.msra.mxu0 0.0
    %107 = vmatprep.subr.mxu0 0.0
    %108 = vmatpush1.msra.mxu0 0.0
    %109 = vmatprep.subr.mxu0 0.0
    %110 = vmatpush1.msra.mxu0 0.0
    %111 = vmatprep.subr.mxu0 0.0
    %112 = vmatpush1.msra.mxu0 0.0
    %113 = vmatprep.subr.mxu0 0.0
    %114 = vmatpush1.msra.mxu0 0.0
    %115 = vmatprep.subr.mxu0 0.0
    %116 = vmatpush1.msra.mxu0 0.0
    %117 = vmatprep.subr.mxu0 0.0
    %118 = vmatpush1.msra.mxu0 0.0
    %119 = vmatprep.subr.mxu0 0.0
    %120 = vmatpush1.msra.mxu0 0.0
    %121 = vmatprep.mubr.f32.mxu0 0.0
    %122 = vmatmul.mubr.f32.gmra.mrb[0].mxu0 %v55
    %v123 = vpop.f32.mrb[0].mxu0
    %v124 = vadd.f32 %v51, %v123
    %v125 = vpop.f32.mrb[0].mxu0
    %126 = vdwg.mxu0
    %vm127 = vcmp.ge.f32.partialorder %v124, 0.0
    %v128 = vmul.f32 %v124, 0.01
    %v129 = vsel %vm127, %v124, %v128
    %v130 = vld [vmem:[%s3] sm:$0xff]
    %v131 = vld [vmem:[%s3 + $0x8] sm:$0xff]
    %v132 = vld [vmem:[%s3 + $0x10] sm:$0xff]
    %v133 = vld [vmem:[%s3 + $0x18] sm:$0xff]
    %v134 = vld [vmem:[%s3 + $0x20] sm:$0xff]
    %v135 = vld [vmem:[%s3 + $0x28] sm:$0xff]
    %v136 = vld [vmem:[%s3 + $0x30] sm:$0xff]
    %v137 = vld [vmem:[%s3 + $0x38] sm:$0xff]
    %v138 = vld [vmem:[%s3 + $0x40] sm:$0xff]
    %v139 = vld [vmem:[%s3 + $0x48] sm:$0xff]
    %v140 = vld [vmem:[%s3 + $0x50] sm:$0xff]
    %v141 = vld [vmem:[%s3 + $0x58] sm:$0xff]
    %v142 = vld [vmem:[%s3 + $0x60] sm:$0xff]
    %v143 = vld [vmem:[%s3 + $0x68] sm:$0xff]
    %v144 = vld [vmem:[%s3 + $0x70] sm:$0xff]
    %v145 = vld [vmem:[%s3 + $0x78] sm:$0xff]
    %v146 = vld [vmem:[%s4] sm:$0x1]
    %v148 = vlaneseq
    %v149 = vshrl.u32 %v148, 7
    %v150 = vsub.s32 0, %v149
    %v151 = vrot.slane %v146, %v150
    %153 = vmatprep.subr.mxu0 0.0
    %154 = vmatpush1.msra.mxu0 %v130
    %155 = vmatprep.subr.mxu0 0.0
    %156 = vmatpush1.msra.mxu0 %v131
    %157 = vmatprep.subr.mxu0 0.0
    %158 = vmatpush1.msra.mxu0 %v132
    %159 = vmatprep.subr.mxu0 0.0
    %160 = vmatpush1.msra.mxu0 %v133
    %161 = vmatprep.subr.mxu0 0.0
    %162 = vmatpush1.msra.mxu0 %v134
    %163 = vmatprep.subr.mxu0 0.0
    %164 = vmatpush1.msra.mxu0 %v135
    %165 = vmatprep.subr.mxu0 0.0
    %166 = vmatpush1.msra.mxu0 %v136
    %167 = vmatprep.subr.mxu0 0.0
    %168 = vmatpush1.msra.mxu0 %v137
    %169 = vmatprep.subr.mxu0 0.0
    %170 = vmatpush1.msra.mxu0 %v138
    %171 = vmatprep.subr.mxu0 0.0
    %172 = vmatpush1.msra.mxu0 %v139
    %173 = vmatprep.subr.mxu0 0.0
    %174 = vmatpush1.msra.mxu0 %v140
    %175 = vmatprep.subr.mxu0 0.0
    %176 = vmatpush1.msra.mxu0 %v141
    %177 = vmatprep.subr.mxu0 0.0
    %178 = vmatpush1.msra.mxu0 %v142
    %179 = vmatprep.subr.mxu0 0.0
    %180 = vmatpush1.msra.mxu0 %v143
    %181 = vmatprep.subr.mxu0 0.0
    %182 = vmatpush1.msra.mxu0 %v144
    %183 = vmatprep.subr.mxu0 0.0
    %184 = vmatpush1.msra.mxu0 %v145
    %185 = vmatprep.subr.mxu0 0.0
    %186 = vmatpush1.msra.mxu0 0.0
    %187 = vmatprep.subr.mxu0 0.0
    %188 = vmatpush1.msra.mxu0 0.0
    %189 = vmatprep.subr.mxu0 0.0
    %190 = vmatpush1.msra.mxu0 0.0
    %191 = vmatprep.subr.mxu0 0.0
    %192 = vmatpush1.msra.mxu0 0.0
    %193 = vmatprep.subr.mxu0 0.0
    %194 = vmatpush1.msra.mxu0 0.0
    %195 = vmatprep.subr.mxu0 0.0
    %196 = vmatpush1.msra.mxu0 0.0
    %197 = vmatprep.subr.mxu0 0.0
    %198 = vmatpush1.msra.mxu0 0.0
    %199 = vmatprep.subr.mxu0 0.0
    %200 = vmatpush1.msra.mxu0 0.0
    %201 = vmatprep.subr.mxu0 0.0
    %202 = vmatpush1.msra.mxu0 0.0
    %203 = vmatprep.subr.mxu0 0.0
    %204 = vmatpush1.msra.mxu0 0.0
    %205 = vmatprep.subr.mxu0 0.0
    %206 = vmatpush1.msra.mxu0 0.0
    %207 = vmatprep.subr.mxu0 0.0
    %208 = vmatpush1.msra.mxu0 0.0
    %209 = vmatprep.subr.mxu0 0.0
    %210 = vmatpush1.msra.mxu0 0.0
    %211 = vmatprep.subr.mxu0 0.0
    %212 = vmatpush1.msra.mxu0 0.0
    %213 = vmatprep.subr.mxu0 0.0
    %214 = vmatpush1.msra.mxu0 0.0
    %215 = vmatprep.subr.mxu0 0.0
    %216 = vmatpush1.msra.mxu0 0.0
    %217 = vmatprep.mubr.f32.mxu0 0.0
    %218 = vmatmul.mubr.f32.gmra.mrb[0].mxu0 %v129
    %v219 = vpop.f32.mrb[0].mxu0
    %v220 = vadd.f32 %v151, %v219
    %v221 = vpop.f32.mrb[0].mxu0
    %222 = vdwg.mxu0
    %vm223 = vcmp.ge.f32.partialorder %v220, 0.0
    %v224 = vmul.f32 %v220, 0.01
    %v225 = vsel %vm223, %v220, %v224
    %v226 = vld [vmem:[%s5] sm:$0xff]
    %v227 = vld [vmem:[%s5 + $0x8] sm:$0xff]
    %v228 = vld [vmem:[%s5 + $0x10] sm:$0xff]
    %v229 = vld [vmem:[%s5 + $0x18] sm:$0xff]
    %v230 = vld [vmem:[%s5 + $0x20] sm:$0xff]
    %v231 = vld [vmem:[%s5 + $0x28] sm:$0xff]
    %v232 = vld [vmem:[%s5 + $0x30] sm:$0xff]
    %v233 = vld [vmem:[%s5 + $0x38] sm:$0xff]
    %v234 = vld [vmem:[%s5 + $0x40] sm:$0xff]
    %v235 = vld [vmem:[%s5 + $0x48] sm:$0xff]
    %v236 = vld [vmem:[%s5 + $0x50] sm:$0xff]
    %v237 = vld [vmem:[%s5 + $0x58] sm:$0xff]
    %v238 = vld [vmem:[%s5 + $0x60] sm:$0xff]
    %v239 = vld [vmem:[%s5 + $0x68] sm:$0xff]
    %v240 = vld [vmem:[%s5 + $0x70] sm:$0xff]
    %v241 = vld [vmem:[%s5 + $0x78] sm:$0xff]
    %v242 = vld [vmem:[%s6] sm:$0x1]
    %v244 = vlaneseq
    %v245 = vshrl.u32 %v244, 7
    %v246 = vsub.s32 0, %v245
    %v247 = vrot.slane %v242, %v246
    %249 = vmatprep.subr.mxu0 0.0
    %250 = vmatpush1.msra.mxu0 %v226
    %251 = vmatprep.subr.mxu0 0.0
    %252 = vmatpush1.msra.mxu0 %v227
    %253 = vmatprep.subr.mxu0 0.0
    %254 = vmatpush1.msra.mxu0 %v228
    %255 = vmatprep.subr.mxu0 0.0
    %256 = vmatpush1.msra.mxu0 %v229
    %257 = vmatprep.subr.mxu0 0.0
    %258 = vmatpush1.msra.mxu0 %v230
    %259 = vmatprep.subr.mxu0 0.0
    %260 = vmatpush1.msra.mxu0 %v231
    %261 = vmatprep.subr.mxu0 0.0
    %262 = vmatpush1.msra.mxu0 %v232
    %263 = vmatprep.subr.mxu0 0.0
    %264 = vmatpush1.msra.mxu0 %v233
    %265 = vmatprep.subr.mxu0 0.0
    %266 = vmatpush1.msra.mxu0 %v234
    %267 = vmatprep.subr.mxu0 0.0
    %268 = vmatpush1.msra.mxu0 %v235
    %269 = vmatprep.subr.mxu0 0.0
    %270 = vmatpush1.msra.mxu0 %v236
    %271 = vmatprep.subr.mxu0 0.0
    %272 = vmatpush1.msra.mxu0 %v237
    %273 = vmatprep.subr.mxu0 0.0
    %274 = vmatpush1.msra.mxu0 %v238
    %275 = vmatprep.subr.mxu0 0.0
    %276 = vmatpush1.msra.mxu0 %v239
    %277 = vmatprep.subr.mxu0 0.0
    %278 = vmatpush1.msra.mxu0 %v240
    %279 = vmatprep.subr.mxu0 0.0
    %280 = vmatpush1.msra.mxu0 %v241
    %281 = vmatprep.subr.mxu0 0.0
    %282 = vmatpush1.msra.mxu0 0.0
    %283 = vmatprep.subr.mxu0 0.0
    %284 = vmatpush1.msra.mxu0 0.0
    %285 = vmatprep.subr.mxu0 0.0
    %286 = vmatpush1.msra.mxu0 0.0
    %287 = vmatprep.subr.mxu0 0.0
    %288 = vmatpush1.msra.mxu0 0.0
    %289 = vmatprep.subr.mxu0 0.0
    %290 = vmatpush1.msra.mxu0 0.0
    %291 = vmatprep.subr.mxu0 0.0
    %292 = vmatpush1.msra.mxu0 0.0
    %293 = vmatprep.subr.mxu0 0.0
    %294 = vmatpush1.msra.mxu0 0.0
    %295 = vmatprep.subr.mxu0 0.0
    %296 = vmatpush1.msra.mxu0 0.0
    %297 = vmatprep.subr.mxu0 0.0
    %298 = vmatpush1.msra.mxu0 0.0
    %299 = vmatprep.subr.mxu0 0.0
    %300 = vmatpush1.msra.mxu0 0.0
    %301 = vmatprep.subr.mxu0 0.0
    %302 = vmatpush1.msra.mxu0 0.0
    %303 = vmatprep.subr.mxu0 0.0
    %304 = vmatpush1.msra.mxu0 0.0
    %305 = vmatprep.subr.mxu0 0.0
    %306 = vmatpush1.msra.mxu0 0.0
    %307 = vmatprep.subr.mxu0 0.0
    %308 = vmatpush1.msra.mxu0 0.0
    %309 = vmatprep.subr.mxu0 0.0
    %310 = vmatpush1.msra.mxu0 0.0
    %311 = vmatprep.subr.mxu0 0.0
    %312 = vmatpush1.msra.mxu0 0.0
    %313 = vmatprep.mubr.f32.mxu0 0.0
    %314 = vmatmul.mubr.f32.gmra.mrb[0].mxu0 %v225
    %v315 = vpop.f32.mrb[0].mxu0
    %v316 = vadd.f32 %v247, %v315
    %v317 = vpop.f32.mrb[0].mxu0
    %318 = vdwg.mxu0
    %vm319 = vcmask 130048
    %320 = vst.msk [vmem:[#allocation5] sm:$0xff] %vm319, %v316
    // Predicated region
    $region34: #{fused_mlp_forward.1} parent=1 // pred_check
      _
    $region35: #{fused_mlp_forward.1} parent=1 // pred_check_branch
      %322 = sbr.rel (0) target = $region37
    $region36: #{fused_mlp_forward.1} parent=1 // pred_region
      %s324 = ssub.s32 128, 128
      %325 = vsyncadd [#allocation4], %s324
      %s327 = sshll.u32 [#allocation5], 4
      %s328 = int_to_ptr.vmem [resolvable:$true] %s327
      %330 = dma.vmem_to_hbm [thread:$0]  %s328, 128, %s7, [#allocation4]
    $region37: #{fused_mlp_forward.1} parent=1 // pred_fallthru
      _
    // Predicated region
    $region38: #{fused_mlp_forward.1} parent=1 // pred_check
      _
    $region39: #{fused_mlp_forward.1} parent=1 // pred_check_branch
      %332 = sbr.rel (0) target = $region41
    $region40: #{fused_mlp_forward.1} parent=1 // pred_region
      %333 = dma.done [#allocation4], 128
    $region41: #{fused_mlp_forward.1} parent=1 // pred_fallthru
      _
    %334 = vsyncpa [#allocation3], 1
    %335 = vsyncpa [#allocation4], 1

</llo_original>
